<compile_context>
chip_gen: v5e
topology: v5e:2x2
jax: 0.10.0
libtpu: 0.0.40
codegen_flags: <defaults>
</compile_context>

<pallas_src>
import jax
import jax.numpy as jnp
from jax.experimental import pallas as pl
from jax.experimental.pallas import tpu as pltpu


def gru_kernel(x_ref,       # (T*B, D)   time-major flattened input
               w_ih_ref,    # (D, 3H)    fused input->hidden weights [r|z|n]
               w_hh_ref,    # (H, 3H)    fused hidden->hidden weights [r|z|n]
               b_i_ref,     # (1, 3H)
               b_h_ref,     # (1, 3H)
               w_fc_ref,    # (H, O)
               b_fc_ref,    # (1, O)
               out_ref,     # (B, O)
               gates_ref):  # (T*B, 3H)  VMEM scratch for the hoisted projection
    TB = x_ref.shape[0]
    H = w_hh_ref.shape[0]
    B = out_ref.shape[0]
    T = TB // B

    # Hoisted input projection: one big MXU matmul covering every timestep,
    # done once outside the sequential recurrence.
    gates_ref[...] = (
        jnp.dot(x_ref[...], w_ih_ref[...], preferred_element_type=jnp.float32)
        + b_i_ref[...]
    )

    w_hh = w_hh_ref[...]
    b_h = b_h_ref[...]

    def step(t, h_prev):
        gi = gates_ref[pl.ds(t * B, B), :]                       # (B, 3H)
        gh = jnp.dot(h_prev, w_hh,
                     preferred_element_type=jnp.float32) + b_h   # (B, 3H)
        # PyTorch GRU cell (gate order r, z, n):
        r = jax.nn.sigmoid(gi[:, :H] + gh[:, :H])
        z = jax.nn.sigmoid(gi[:, H:2 * H] + gh[:, H:2 * H])
        n = jnp.tanh(gi[:, 2 * H:] + r * gh[:, 2 * H:])
        return n + z * (h_prev - n)             # == (1 - z) * n + z * h_prev

    h_last = jax.lax.fori_loop(0, T, step,
                               jnp.zeros((B, H), jnp.float32),
                               unroll=True)

    # Fused fc projection of the last timestep's hidden state.
    out_ref[...] = (
        jnp.dot(h_last, w_fc_ref[...], preferred_element_type=jnp.float32)
        + b_fc_ref[...]
    ).astype(out_ref.dtype)


def gru_model_forward(x, params):
    """x: (B, T, D) float32 -> (B, output_dim) float32."""
    B, T, D = x.shape
    H3 = params["w_ih"].shape[1]
    O = params["w_fc"].shape[1]

    # Time-major flatten (cheap XLA layout plumbing outside the kernel):
    # row t*B + b of xt holds timestep t of batch element b.
    xt = jnp.swapaxes(x, 0, 1).reshape(T * B, D)

    vmem = pl.BlockSpec(memory_space=pltpu.MemorySpace.VMEM)

    return pl.pallas_call(
        gru_kernel,
        out_shape=jax.ShapeDtypeStruct((B, O), jnp.float32),
        in_specs=[vmem] * 7,
        out_specs=vmem,
        scratch_shapes=[pltpu.VMEM((T * B, H3), jnp.float32)],
    )(
        xt,
        params["w_ih"], params["w_hh"],
        params["b_i"], params["b_h"],
        params["w_fc"], params["b_fc"],
    )


def init_params(key, input_dim, hidden_dim, output_dim):
    """Fused-gate parameters, PyTorch-style uniform(-1/sqrt(H), 1/sqrt(H)) init.

    Gate column order inside the fused 3H axis is [r | z | n], matching
    torch.nn.GRU. Weights are stored pre-transposed for row-major `x @ W`.
    """
    k = 1.0 / jnp.sqrt(jnp.float32(hidden_dim))
    keys = jax.random.split(key, 6)
    u = lambda kk, shape: jax.random.uniform(kk, shape, jnp.float32, -k, k)
    return {
        "w_ih": u(keys[0], (input_dim, 3 * hidden_dim)),   # (D, 3H)
        "w_hh": u(keys[1], (hidden_dim, 3 * hidden_dim)),  # (H, 3H)
        "b_i": u(keys[2], (1, 3 * hidden_dim)),
        "b_h": u(keys[3], (1, 3 * hidden_dim)),
        "w_fc": u(keys[4], (hidden_dim, output_dim)),      # (H, O)
        "b_fc": u(keys[5], (1, output_dim)),
    }


def reference_forward(x, p):
    """Pure-JAX reference (same math as torch.nn.GRU(batch_first=True) + Linear)."""
    B, T, D = x.shape
    H = p["w_hh"].shape[0]

    def step(h, x_t):
        gi = x_t @ p["w_ih"] + p["b_i"]
        gh = h @ p["w_hh"] + p["b_h"]
        r = jax.nn.sigmoid(gi[:, :H] + gh[:, :H])
        z = jax.nn.sigmoid(gi[:, H:2 * H] + gh[:, H:2 * H])
        n = jnp.tanh(gi[:, 2 * H:] + r * gh[:, 2 * H:])
        return (1.0 - z) * n + z * h, None

    h_last, _ = jax.lax.scan(step, jnp.zeros((B, H), jnp.float32),
                             jnp.swapaxes(x, 0, 1))
    return h_last @ p["w_fc"] + p["b_fc"]


if __name__ == "__main__":
    B, T, D, H, O = 2, 8, 16, 32, 8

    x = jax.random.normal(jax.random.PRNGKey(0), (B, T, D), dtype=jnp.float32)
    params = init_params(jax.random.PRNGKey(42), D, H, O)

    out = jax.block_until_ready(gru_model_forward(x, params))
    ref = reference_forward(x, params)

    assert out.shape == (B, O)
    assert jnp.allclose(out, ref, atol=1e-5, rtol=1e-5), \
        f"max abs err {jnp.max(jnp.abs(out - ref))}"

    print("KERNEL_OK")
</pallas_src>

<mosaic_0001>
module attributes {stable_mosaic.version = 11 : i64} {
  func.func @gru_kernel(%arg0: memref<16x16xf32, #tpu.memory_space<vmem>>, %arg1: memref<16x96xf32, #tpu.memory_space<vmem>>, %arg2: memref<32x96xf32, #tpu.memory_space<vmem>>, %arg3: memref<1x96xf32, #tpu.memory_space<vmem>>, %arg4: memref<1x96xf32, #tpu.memory_space<vmem>>, %arg5: memref<32x8xf32, #tpu.memory_space<vmem>>, %arg6: memref<1x8xf32, #tpu.memory_space<vmem>>, %arg7: memref<2x8xf32, #tpu.memory_space<vmem>>, %arg8: memref<16x96xf32, #tpu.memory_space<vmem>>) attributes {dimension_semantics = [], scalar_prefetch = 0 : i64, scratch_operands = 1 : i64, tpu.core_type = #tpu.core_type<tc>} {
    %c0 = arith.constant 0 : index
    %c0_0 = arith.constant 0 : index
    %0 = vector.load %arg0[%c0, %c0_0] : memref<16x16xf32, #tpu.memory_space<vmem>>, vector<16x16xf32>
    %c0_1 = arith.constant 0 : index
    %c0_2 = arith.constant 0 : index
    %1 = vector.load %arg1[%c0_1, %c0_2] : memref<16x96xf32, #tpu.memory_space<vmem>>, vector<16x96xf32>
    %cst = arith.constant dense<0.000000e+00> : vector<16x96xf32>
    %2 = tpu.matmul %0, %1, %cst {dimension_numbers = #tpu.dot_dimension_numbers<[1], [0], [0], [1], [0, 0, 1, 1], [], []>} : vector<16x16xf32>, vector<16x96xf32>, vector<16x96xf32> -> vector<16x96xf32>
    %c0_3 = arith.constant 0 : index
    %c0_4 = arith.constant 0 : index
    %3 = vector.load %arg3[%c0_3, %c0_4] : memref<1x96xf32, #tpu.memory_space<vmem>>, vector<1x96xf32>
    %4 = vector.broadcast %3 : vector<1x96xf32> to vector<16x96xf32>
    %5 = arith.addf %2, %4 : vector<16x96xf32>
    %c0_5 = arith.constant 0 : index
    %c0_6 = arith.constant 0 : index
    %6 = vector.load %arg8[%c0_5, %c0_6] : memref<16x96xf32, #tpu.memory_space<vmem>>, vector<16x96xf32>
    tpu.vector_store %arg8[%c0_5, %c0_6], %5 {strides = array<i32>} : memref<16x96xf32, #tpu.memory_space<vmem>>, vector<16x96xf32>,
    %c0_7 = arith.constant 0 : index
    %c0_8 = arith.constant 0 : index
    %7 = vector.load %arg2[%c0_7, %c0_8] : memref<32x96xf32, #tpu.memory_space<vmem>>, vector<32x96xf32>
    %c0_9 = arith.constant 0 : index
    %c0_10 = arith.constant 0 : index
    %8 = vector.load %arg4[%c0_9, %c0_10] : memref<1x96xf32, #tpu.memory_space<vmem>>, vector<1x96xf32>
    %cst_11 = arith.constant 0.000000e+00 : f32
    %9 = vector.broadcast %cst_11 : f32 to vector<2x32xf32>
    %c0_i32 = arith.constant 0 : i32
    %c2_i32 = arith.constant 2 : i32
    %10 = arith.muli %c0_i32, %c2_i32 : i32
    %11 = arith.index_cast %10 : i32 to index
    %c0_12 = arith.constant 0 : index
    %12 = vector.load %arg8[%11, %c0_12] : memref<16x96xf32, #tpu.memory_space<vmem>>, vector<2x96xf32>
    %cst_13 = arith.constant dense<0.000000e+00> : vector<2x96xf32>
    %13 = tpu.matmul %9, %7, %cst_13 {dimension_numbers = #tpu.dot_dimension_numbers<[1], [0], [0], [1], [0, 0, 1, 1], [], []>} : vector<2x32xf32>, vector<32x96xf32>, vector<2x96xf32> -> vector<2x96xf32>
    %14 = vector.broadcast %8 : vector<1x96xf32> to vector<2x96xf32>
    %15 = arith.addf %13, %14 : vector<2x96xf32>
    %16 = vector.extract_strided_slice %12 {offsets = [0, 0], sizes = [2, 32], strides = [1, 1]} : vector<2x96xf32> to vector<2x32xf32>
    %17 = vector.extract_strided_slice %15 {offsets = [0, 0], sizes = [2, 32], strides = [1, 1]} : vector<2x96xf32> to vector<2x32xf32>
    %18 = arith.addf %16, %17 : vector<2x32xf32>
    %19 = arith.negf %18 : vector<2x32xf32>
    %20 = math.exp %19 : vector<2x32xf32>
    %cst_14 = arith.constant 1.000000e+00 : f32
    %21 = vector.broadcast %cst_14 : f32 to vector<2x32xf32>
    %22 = arith.addf %21, %20 : vector<2x32xf32>
    %23 = arith.divf %21, %22 : vector<2x32xf32>
    %24 = vector.extract_strided_slice %12 {offsets = [0, 32], sizes = [2, 32], strides = [1, 1]} : vector<2x96xf32> to vector<2x32xf32>
    %25 = vector.extract_strided_slice %15 {offsets = [0, 32], sizes = [2, 32], strides = [1, 1]} : vector<2x96xf32> to vector<2x32xf32>
    %26 = arith.addf %24, %25 : vector<2x32xf32>
    %27 = arith.negf %26 : vector<2x32xf32>
    %28 = math.exp %27 : vector<2x32xf32>
    %cst_15 = arith.constant 1.000000e+00 : f32
    %29 = vector.broadcast %cst_15 : f32 to vector<2x32xf32>
    %30 = arith.addf %29, %28 : vector<2x32xf32>
    %31 = arith.divf %29, %30 : vector<2x32xf32>
    %32 = vector.extract_strided_slice %12 {offsets = [0, 64], sizes = [2, 32], strides = [1, 1]} : vector<2x96xf32> to vector<2x32xf32>
    %33 = vector.extract_strided_slice %15 {offsets = [0, 64], sizes = [2, 32], strides = [1, 1]} : vector<2x96xf32> to vector<2x32xf32>
    %34 = arith.mulf %23, %33 : vector<2x32xf32>
    %35 = arith.addf %32, %34 : vector<2x32xf32>
    %36 = math.tanh %35 : vector<2x32xf32>
    %37 = arith.subf %9, %36 : vector<2x32xf32>
    %38 = arith.mulf %31, %37 : vector<2x32xf32>
    %39 = arith.addf %36, %38 : vector<2x32xf32>
    %c1_i32 = arith.constant 1 : i32
    %c2_i32_16 = arith.constant 2 : i32
    %40 = arith.muli %c1_i32, %c2_i32_16 : i32
    %41 = arith.index_cast %40 : i32 to index
    %c0_17 = arith.constant 0 : index
    %42 = vector.load %arg8[%41, %c0_17] : memref<16x96xf32, #tpu.memory_space<vmem>>, vector<2x96xf32>
    %cst_18 = arith.constant dense<0.000000e+00> : vector<2x96xf32>
    %43 = tpu.matmul %39, %7, %cst_18 {dimension_numbers = #tpu.dot_dimension_numbers<[1], [0], [0], [1], [0, 0, 1, 1], [], []>} : vector<2x32xf32>, vector<32x96xf32>, vector<2x96xf32> -> vector<2x96xf32>
    %44 = vector.broadcast %8 : vector<1x96xf32> to vector<2x96xf32>
    %45 = arith.addf %43, %44 : vector<2x96xf32>
    %46 = vector.extract_strided_slice %42 {offsets = [0, 0], sizes = [2, 32], strides = [1, 1]} : vector<2x96xf32> to vector<2x32xf32>
    %47 = vector.extract_strided_slice %45 {offsets = [0, 0], sizes = [2, 32], strides = [1, 1]} : vector<2x96xf32> to vector<2x32xf32>
    %48 = arith.addf %46, %47 : vector<2x32xf32>
    %49 = arith.negf %48 : vector<2x32xf32>
    %50 = math.exp %49 : vector<2x32xf32>
    %cst_19 = arith.constant 1.000000e+00 : f32
    %51 = vector.broadcast %cst_19 : f32 to vector<2x32xf32>
    %52 = arith.addf %51, %50 : vector<2x32xf32>
    %53 = arith.divf %51, %52 : vector<2x32xf32>
    %54 = vector.extract_strided_slice %42 {offsets = [0, 32], sizes = [2, 32], strides = [1, 1]} : vector<2x96xf32> to vector<2x32xf32>
    %55 = vector.extract_strided_slice %45 {offsets = [0, 32], sizes = [2, 32], strides = [1, 1]} : vector<2x96xf32> to vector<2x32xf32>
    %56 = arith.addf %54, %55 : vector<2x32xf32>
    %57 = arith.negf %56 : vector<2x32xf32>
    %58 = math.exp %57 : vector<2x32xf32>
    %cst_20 = arith.constant 1.000000e+00 : f32
    %59 = vector.broadcast %cst_20 : f32 to vector<2x32xf32>
    %60 = arith.addf %59, %58 : vector<2x32xf32>
    %61 = arith.divf %59, %60 : vector<2x32xf32>
    %62 = vector.extract_strided_slice %42 {offsets = [0, 64], sizes = [2, 32], strides = [1, 1]} : vector<2x96xf32> to vector<2x32xf32>
    %63 = vector.extract_strided_slice %45 {offsets = [0, 64], sizes = [2, 32], strides = [1, 1]} : vector<2x96xf32> to vector<2x32xf32>
    %64 = arith.mulf %53, %63 : vector<2x32xf32>
    %65 = arith.addf %62, %64 : vector<2x32xf32>
    %66 = math.tanh %65 : vector<2x32xf32>
    %67 = arith.subf %39, %66 : vector<2x32xf32>
    %68 = arith.mulf %61, %67 : vector<2x32xf32>
    %69 = arith.addf %66, %68 : vector<2x32xf32>
    %c2_i32_21 = arith.constant 2 : i32
    %c2_i32_22 = arith.constant 2 : i32
    %70 = arith.muli %c2_i32_21, %c2_i32_22 : i32
    %71 = arith.index_cast %70 : i32 to index
    %c0_23 = arith.constant 0 : index
    %72 = vector.load %arg8[%71, %c0_23] : memref<16x96xf32, #tpu.memory_space<vmem>>, vector<2x96xf32>
    %cst_24 = arith.constant dense<0.000000e+00> : vector<2x96xf32>
    %73 = tpu.matmul %69, %7, %cst_24 {dimension_numbers = #tpu.dot_dimension_numbers<[1], [0], [0], [1], [0, 0, 1, 1], [], []>} : vector<2x32xf32>, vector<32x96xf32>, vector<2x96xf32> -> vector<2x96xf32>
    %74 = vector.broadcast %8 : vector<1x96xf32> to vector<2x96xf32>
    %75 = arith.addf %73, %74 : vector<2x96xf32>
    %76 = vector.extract_strided_slice %72 {offsets = [0, 0], sizes = [2, 32], strides = [1, 1]} : vector<2x96xf32> to vector<2x32xf32>
    %77 = vector.extract_strided_slice %75 {offsets = [0, 0], sizes = [2, 32], strides = [1, 1]} : vector<2x96xf32> to vector<2x32xf32>
    %78 = arith.addf %76, %77 : vector<2x32xf32>
    %79 = arith.negf %78 : vector<2x32xf32>
    %80 = math.exp %79 : vector<2x32xf32>
    %cst_25 = arith.constant 1.000000e+00 : f32
    %81 = vector.broadcast %cst_25 : f32 to vector<2x32xf32>
    %82 = arith.addf %81, %80 : vector<2x32xf32>
    %83 = arith.divf %81, %82 : vector<2x32xf32>
    %84 = vector.extract_strided_slice %72 {offsets = [0, 32], sizes = [2, 32], strides = [1, 1]} : vector<2x96xf32> to vector<2x32xf32>
    %85 = vector.extract_strided_slice %75 {offsets = [0, 32], sizes = [2, 32], strides = [1, 1]} : vector<2x96xf32> to vector<2x32xf32>
    %86 = arith.addf %84, %85 : vector<2x32xf32>
    %87 = arith.negf %86 : vector<2x32xf32>
    %88 = math.exp %87 : vector<2x32xf32>
    %cst_26 = arith.constant 1.000000e+00 : f32
    %89 = vector.broadcast %cst_26 : f32 to vector<2x32xf32>
    %90 = arith.addf %89, %88 : vector<2x32xf32>
    %91 = arith.divf %89, %90 : vector<2x32xf32>
    %92 = vector.extract_strided_slice %72 {offsets = [0, 64], sizes = [2, 32], strides = [1, 1]} : vector<2x96xf32> to vector<2x32xf32>
    %93 = vector.extract_strided_slice %75 {offsets = [0, 64], sizes = [2, 32], strides = [1, 1]} : vector<2x96xf32> to vector<2x32xf32>
    %94 = arith.mulf %83, %93 : vector<2x32xf32>
    %95 = arith.addf %92, %94 : vector<2x32xf32>
    %96 = math.tanh %95 : vector<2x32xf32>
    %97 = arith.subf %69, %96 : vector<2x32xf32>
    %98 = arith.mulf %91, %97 : vector<2x32xf32>
    %99 = arith.addf %96, %98 : vector<2x32xf32>
    %c3_i32 = arith.constant 3 : i32
    %c2_i32_27 = arith.constant 2 : i32
    %100 = arith.muli %c3_i32, %c2_i32_27 : i32
    %101 = arith.index_cast %100 : i32 to index
    %c0_28 = arith.constant 0 : index
    %102 = vector.load %arg8[%101, %c0_28] : memref<16x96xf32, #tpu.memory_space<vmem>>, vector<2x96xf32>
    %cst_29 = arith.constant dense<0.000000e+00> : vector<2x96xf32>
    %103 = tpu.matmul %99, %7, %cst_29 {dimension_numbers = #tpu.dot_dimension_numbers<[1], [0], [0], [1], [0, 0, 1, 1], [], []>} : vector<2x32xf32>, vector<32x96xf32>, vector<2x96xf32> -> vector<2x96xf32>
    %104 = vector.broadcast %8 : vector<1x96xf32> to vector<2x96xf32>
    %105 = arith.addf %103, %104 : vector<2x96xf32>
    %106 = vector.extract_strided_slice %102 {offsets = [0, 0], sizes = [2, 32], strides = [1, 1]} : vector<2x96xf32> to vector<2x32xf32>
    %107 = vector.extract_strided_slice %105 {offsets = [0, 0], sizes = [2, 32], strides = [1, 1]} : vector<2x96xf32> to vector<2x32xf32>
    %108 = arith.addf %106, %107 : vector<2x32xf32>
    %109 = arith.negf %108 : vector<2x32xf32>
    %110 = math.exp %109 : vector<2x32xf32>
    %cst_30 = arith.constant 1.000000e+00 : f32
    %111 = vector.broadcast %cst_30 : f32 to vector<2x32xf32>
    %112 = arith.addf %111, %110 : vector<2x32xf32>
    %113 = arith.divf %111, %112 : vector<2x32xf32>
    %114 = vector.extract_strided_slice %102 {offsets = [0, 32], sizes = [2, 32], strides = [1, 1]} : vector<2x96xf32> to vector<2x32xf32>
    %115 = vector.extract_strided_slice %105 {offsets = [0, 32], sizes = [2, 32], strides = [1, 1]} : vector<2x96xf32> to vector<2x32xf32>
    %116 = arith.addf %114, %115 : vector<2x32xf32>
    %117 = arith.negf %116 : vector<2x32xf32>
    %118 = math.exp %117 : vector<2x32xf32>
    %cst_31 = arith.constant 1.000000e+00 : f32
    %119 = vector.broadcast %cst_31 : f32 to vector<2x32xf32>
    %120 = arith.addf %119, %118 : vector<2x32xf32>
    %121 = arith.divf %119, %120 : vector<2x32xf32>
    %122 = vector.extract_strided_slice %102 {offsets = [0, 64], sizes = [2, 32], strides = [1, 1]} : vector<2x96xf32> to vector<2x32xf32>
    %123 = vector.extract_strided_slice %105 {offsets = [0, 64], sizes = [2, 32], strides = [1, 1]} : vector<2x96xf32> to vector<2x32xf32>
    %124 = arith.mulf %113, %123 : vector<2x32xf32>
    %125 = arith.addf %122, %124 : vector<2x32xf32>
    %126 = math.tanh %125 : vector<2x32xf32>
    %127 = arith.subf %99, %126 : vector<2x32xf32>
    %128 = arith.mulf %121, %127 : vector<2x32xf32>
    %129 = arith.addf %126, %128 : vector<2x32xf32>
    %c4_i32 = arith.constant 4 : i32
    %c2_i32_32 = arith.constant 2 : i32
    %130 = arith.muli %c4_i32, %c2_i32_32 : i32
    %131 = arith.index_cast %130 : i32 to index
    %c0_33 = arith.constant 0 : index
    %132 = vector.load %arg8[%131, %c0_33] : memref<16x96xf32, #tpu.memory_space<vmem>>, vector<2x96xf32>
    %cst_34 = arith.constant dense<0.000000e+00> : vector<2x96xf32>
    %133 = tpu.matmul %129, %7, %cst_34 {dimension_numbers = #tpu.dot_dimension_numbers<[1], [0], [0], [1], [0, 0, 1, 1], [], []>} : vector<2x32xf32>, vector<32x96xf32>, vector<2x96xf32> -> vector<2x96xf32>
    %134 = vector.broadcast %8 : vector<1x96xf32> to vector<2x96xf32>
    %135 = arith.addf %133, %134 : vector<2x96xf32>
    %136 = vector.extract_strided_slice %132 {offsets = [0, 0], sizes = [2, 32], strides = [1, 1]} : vector<2x96xf32> to vector<2x32xf32>
    %137 = vector.extract_strided_slice %135 {offsets = [0, 0], sizes = [2, 32], strides = [1, 1]} : vector<2x96xf32> to vector<2x32xf32>
    %138 = arith.addf %136, %137 : vector<2x32xf32>
    %139 = arith.negf %138 : vector<2x32xf32>
    %140 = math.exp %139 : vector<2x32xf32>
    %cst_35 = arith.constant 1.000000e+00 : f32
    %141 = vector.broadcast %cst_35 : f32 to vector<2x32xf32>
    %142 = arith.addf %141, %140 : vector<2x32xf32>
    %143 = arith.divf %141, %142 : vector<2x32xf32>
    %144 = vector.extract_strided_slice %132 {offsets = [0, 32], sizes = [2, 32], strides = [1, 1]} : vector<2x96xf32> to vector<2x32xf32>
    %145 = vector.extract_strided_slice %135 {offsets = [0, 32], sizes = [2, 32], strides = [1, 1]} : vector<2x96xf32> to vector<2x32xf32>
    %146 = arith.addf %144, %145 : vector<2x32xf32>
    %147 = arith.negf %146 : vector<2x32xf32>
    %148 = math.exp %147 : vector<2x32xf32>
    %cst_36 = arith.constant 1.000000e+00 : f32
    %149 = vector.broadcast %cst_36 : f32 to vector<2x32xf32>
    %150 = arith.addf %149, %148 : vector<2x32xf32>
    %151 = arith.divf %149, %150 : vector<2x32xf32>
    %152 = vector.extract_strided_slice %132 {offsets = [0, 64], sizes = [2, 32], strides = [1, 1]} : vector<2x96xf32> to vector<2x32xf32>
    %153 = vector.extract_strided_slice %135 {offsets = [0, 64], sizes = [2, 32], strides = [1, 1]} : vector<2x96xf32> to vector<2x32xf32>
    %154 = arith.mulf %143, %153 : vector<2x32xf32>
    %155 = arith.addf %152, %154 : vector<2x32xf32>
    %156 = math.tanh %155 : vector<2x32xf32>
    %157 = arith.subf %129, %156 : vector<2x32xf32>
    %158 = arith.mulf %151, %157 : vector<2x32xf32>
    %159 = arith.addf %156, %158 : vector<2x32xf32>
    %c5_i32 = arith.constant 5 : i32
    %c2_i32_37 = arith.constant 2 : i32
    %160 = arith.muli %c5_i32, %c2_i32_37 : i32
    %161 = arith.index_cast %160 : i32 to index
    %c0_38 = arith.constant 0 : index
    %162 = vector.load %arg8[%161, %c0_38] : memref<16x96xf32, #tpu.memory_space<vmem>>, vector<2x96xf32>
    %cst_39 = arith.constant dense<0.000000e+00> : vector<2x96xf32>
    %163 = tpu.matmul %159, %7, %cst_39 {dimension_numbers = #tpu.dot_dimension_numbers<[1], [0], [0], [1], [0, 0, 1, 1], [], []>} : vector<2x32xf32>, vector<32x96xf32>, vector<2x96xf32> -> vector<2x96xf32>
    %164 = vector.broadcast %8 : vector<1x96xf32> to vector<2x96xf32>
    %165 = arith.addf %163, %164 : vector<2x96xf32>
    %166 = vector.extract_strided_slice %162 {offsets = [0, 0], sizes = [2, 32], strides = [1, 1]} : vector<2x96xf32> to vector<2x32xf32>
    %167 = vector.extract_strided_slice %165 {offsets = [0, 0], sizes = [2, 32], strides = [1, 1]} : vector<2x96xf32> to vector<2x32xf32>
    %168 = arith.addf %166, %167 : vector<2x32xf32>
    %169 = arith.negf %168 : vector<2x32xf32>
    %170 = math.exp %169 : vector<2x32xf32>
    %cst_40 = arith.constant 1.000000e+00 : f32
    %171 = vector.broadcast %cst_40 : f32 to vector<2x32xf32>
    %172 = arith.addf %171, %170 : vector<2x32xf32>
    %173 = arith.divf %171, %172 : vector<2x32xf32>
    %174 = vector.extract_strided_slice %162 {offsets = [0, 32], sizes = [2, 32], strides = [1, 1]} : vector<2x96xf32> to vector<2x32xf32>
    %175 = vector.extract_strided_slice %165 {offsets = [0, 32], sizes = [2, 32], strides = [1, 1]} : vector<2x96xf32> to vector<2x32xf32>
    %176 = arith.addf %174, %175 : vector<2x32xf32>
    %177 = arith.negf %176 : vector<2x32xf32>
    %178 = math.exp %177 : vector<2x32xf32>
    %cst_41 = arith.constant 1.000000e+00 : f32
    %179 = vector.broadcast %cst_41 : f32 to vector<2x32xf32>
    %180 = arith.addf %179, %178 : vector<2x32xf32>
    %181 = arith.divf %179, %180 : vector<2x32xf32>
    %182 = vector.extract_strided_slice %162 {offsets = [0, 64], sizes = [2, 32], strides = [1, 1]} : vector<2x96xf32> to vector<2x32xf32>
    %183 = vector.extract_strided_slice %165 {offsets = [0, 64], sizes = [2, 32], strides = [1, 1]} : vector<2x96xf32> to vector<2x32xf32>
    %184 = arith.mulf %173, %183 : vector<2x32xf32>
    %185 = arith.addf %182, %184 : vector<2x32xf32>
    %186 = math.tanh %185 : vector<2x32xf32>
    %187 = arith.subf %159, %186 : vector<2x32xf32>
    %188 = arith.mulf %181, %187 : vector<2x32xf32>
    %189 = arith.addf %186, %188 : vector<2x32xf32>
    %c6_i32 = arith.constant 6 : i32
    %c2_i32_42 = arith.constant 2 : i32
    %190 = arith.muli %c6_i32, %c2_i32_42 : i32
    %191 = arith.index_cast %190 : i32 to index
    %c0_43 = arith.constant 0 : index
    %192 = vector.load %arg8[%191, %c0_43] : memref<16x96xf32, #tpu.memory_space<vmem>>, vector<2x96xf32>
    %cst_44 = arith.constant dense<0.000000e+00> : vector<2x96xf32>
    %193 = tpu.matmul %189, %7, %cst_44 {dimension_numbers = #tpu.dot_dimension_numbers<[1], [0], [0], [1], [0, 0, 1, 1], [], []>} : vector<2x32xf32>, vector<32x96xf32>, vector<2x96xf32> -> vector<2x96xf32>
    %194 = vector.broadcast %8 : vector<1x96xf32> to vector<2x96xf32>
    %195 = arith.addf %193, %194 : vector<2x96xf32>
    %196 = vector.extract_strided_slice %192 {offsets = [0, 0], sizes = [2, 32], strides = [1, 1]} : vector<2x96xf32> to vector<2x32xf32>
    %197 = vector.extract_strided_slice %195 {offsets = [0, 0], sizes = [2, 32], strides = [1, 1]} : vector<2x96xf32> to vector<2x32xf32>
    %198 = arith.addf %196, %197 : vector<2x32xf32>
    %199 = arith.negf %198 : vector<2x32xf32>
    %200 = math.exp %199 : vector<2x32xf32>
    %cst_45 = arith.constant 1.000000e+00 : f32
    %201 = vector.broadcast %cst_45 : f32 to vector<2x32xf32>
    %202 = arith.addf %201, %200 : vector<2x32xf32>
    %203 = arith.divf %201, %202 : vector<2x32xf32>
    %204 = vector.extract_strided_slice %192 {offsets = [0, 32], sizes = [2, 32], strides = [1, 1]} : vector<2x96xf32> to vector<2x32xf32>
    %205 = vector.extract_strided_slice %195 {offsets = [0, 32], sizes = [2, 32], strides = [1, 1]} : vector<2x96xf32> to vector<2x32xf32>
    %206 = arith.addf %204, %205 : vector<2x32xf32>
    %207 = arith.negf %206 : vector<2x32xf32>
    %208 = math.exp %207 : vector<2x32xf32>
    %cst_46 = arith.constant 1.000000e+00 : f32
    %209 = vector.broadcast %cst_46 : f32 to vector<2x32xf32>
    %210 = arith.addf %209, %208 : vector<2x32xf32>
    %211 = arith.divf %209, %210 : vector<2x32xf32>
    %212 = vector.extract_strided_slice %192 {offsets = [0, 64], sizes = [2, 32], strides = [1, 1]} : vector<2x96xf32> to vector<2x32xf32>
    %213 = vector.extract_strided_slice %195 {offsets = [0, 64], sizes = [2, 32], strides = [1, 1]} : vector<2x96xf32> to vector<2x32xf32>
    %214 = arith.mulf %203, %213 : vector<2x32xf32>
    %215 = arith.addf %212, %214 : vector<2x32xf32>
    %216 = math.tanh %215 : vector<2x32xf32>
    %217 = arith.subf %189, %216 : vector<2x32xf32>
    %218 = arith.mulf %211, %217 : vector<2x32xf32>
    %219 = arith.addf %216, %218 : vector<2x32xf32>
    %c7_i32 = arith.constant 7 : i32
    %c2_i32_47 = arith.constant 2 : i32
    %220 = arith.muli %c7_i32, %c2_i32_47 : i32
    %221 = arith.index_cast %220 : i32 to index
    %c0_48 = arith.constant 0 : index
    %222 = vector.load %arg8[%221, %c0_48] : memref<16x96xf32, #tpu.memory_space<vmem>>, vector<2x96xf32>
    %cst_49 = arith.constant dense<0.000000e+00> : vector<2x96xf32>
    %223 = tpu.matmul %219, %7, %cst_49 {dimension_numbers = #tpu.dot_dimension_numbers<[1], [0], [0], [1], [0, 0, 1, 1], [], []>} : vector<2x32xf32>, vector<32x96xf32>, vector<2x96xf32> -> vector<2x96xf32>
    %224 = vector.broadcast %8 : vector<1x96xf32> to vector<2x96xf32>
    %225 = arith.addf %223, %224 : vector<2x96xf32>
    %226 = vector.extract_strided_slice %222 {offsets = [0, 0], sizes = [2, 32], strides = [1, 1]} : vector<2x96xf32> to vector<2x32xf32>
    %227 = vector.extract_strided_slice %225 {offsets = [0, 0], sizes = [2, 32], strides = [1, 1]} : vector<2x96xf32> to vector<2x32xf32>
    %228 = arith.addf %226, %227 : vector<2x32xf32>
    %229 = arith.negf %228 : vector<2x32xf32>
    %230 = math.exp %229 : vector<2x32xf32>
    %cst_50 = arith.constant 1.000000e+00 : f32
    %231 = vector.broadcast %cst_50 : f32 to vector<2x32xf32>
    %232 = arith.addf %231, %230 : vector<2x32xf32>
    %233 = arith.divf %231, %232 : vector<2x32xf32>
    %234 = vector.extract_strided_slice %222 {offsets = [0, 32], sizes = [2, 32], strides = [1, 1]} : vector<2x96xf32> to vector<2x32xf32>
    %235 = vector.extract_strided_slice %225 {offsets = [0, 32], sizes = [2, 32], strides = [1, 1]} : vector<2x96xf32> to vector<2x32xf32>
    %236 = arith.addf %234, %235 : vector<2x32xf32>
    %237 = arith.negf %236 : vector<2x32xf32>
    %238 = math.exp %237 : vector<2x32xf32>
    %cst_51 = arith.constant 1.000000e+00 : f32
    %239 = vector.broadcast %cst_51 : f32 to vector<2x32xf32>
    %240 = arith.addf %239, %238 : vector<2x32xf32>
    %241 = arith.divf %239, %240 : vector<2x32xf32>
    %242 = vector.extract_strided_slice %222 {offsets = [0, 64], sizes = [2, 32], strides = [1, 1]} : vector<2x96xf32> to vector<2x32xf32>
    %243 = vector.extract_strided_slice %225 {offsets = [0, 64], sizes = [2, 32], strides = [1, 1]} : vector<2x96xf32> to vector<2x32xf32>
    %244 = arith.mulf %233, %243 : vector<2x32xf32>
    %245 = arith.addf %242, %244 : vector<2x32xf32>
    %246 = math.tanh %245 : vector<2x32xf32>
    %247 = arith.subf %219, %246 : vector<2x32xf32>
    %248 = arith.mulf %241, %247 : vector<2x32xf32>
    %249 = arith.addf %246, %248 : vector<2x32xf32>
    %c8_i32 = arith.constant 8 : i32
    %c0_52 = arith.constant 0 : index
    %c0_53 = arith.constant 0 : index
    %250 = vector.load %arg5[%c0_52, %c0_53] : memref<32x8xf32, #tpu.memory_space<vmem>>, vector<32x8xf32>
    %cst_54 = arith.constant dense<0.000000e+00> : vector<2x8xf32>
    %251 = tpu.matmul %249, %250, %cst_54 {dimension_numbers = #tpu.dot_dimension_numbers<[1], [0], [0], [1], [0, 0, 1, 1], [], []>} : vector<2x32xf32>, vector<32x8xf32>, vector<2x8xf32> -> vector<2x8xf32>
    %c0_55 = arith.constant 0 : index
    %c0_56 = arith.constant 0 : index
    %252 = vector.load %arg6[%c0_55, %c0_56] : memref<1x8xf32, #tpu.memory_space<vmem>>, vector<1x8xf32>
    %253 = vector.broadcast %252 : vector<1x8xf32> to vector<2x8xf32>
    %254 = arith.addf %251, %253 : vector<2x8xf32>
    %c0_57 = arith.constant 0 : index
    %c0_58 = arith.constant 0 : index
    %255 = vector.load %arg7[%c0_57, %c0_58] : memref<2x8xf32, #tpu.memory_space<vmem>>, vector<2x8xf32>
    tpu.vector_store %arg7[%c0_57, %c0_58], %254 {strides = array<i32>} : memref<2x8xf32, #tpu.memory_space<vmem>>, vector<2x8xf32>,
    return
  }
}

</mosaic_0001>

<llo_original>
// kernel: tpu_custom_call.1
$region0: #{tpu_custom_call.1}
  #allocation0 [shape = 'u32[]', space=smem, size = 0x4, offset = 0x4, fixed_abs, tag = 'smem constant byte address 0x4 - core index']
  #allocation1 [shape = 'u32[72,128]{1,0:T(1,128)}', space=vmem, size = 0x9000, scoped, tag = 'internal scratch']
  #allocation2 [shape = 'f32[16,96]{1,0:T(8,128)}', space=vmem, size = 0x2000, scoped, tag = 'scratch operand']
  %s0 = inlined_call_operand.hbm [shape: f32[16,16], index: 0, kind: input, shape index: {}]
  %s1 = inlined_call_operand.hbm [shape: f32[16,96], index: 1, kind: input, shape index: {}]
  %s2 = inlined_call_operand.vmem [shape: f32[32,96], index: 2, kind: input, shape index: {}]
  %s3 = inlined_call_operand.vmem [shape: f32[1,96], index: 3, kind: input, shape index: {}]
  %s4 = inlined_call_operand.vmem [shape: f32[1,96], index: 4, kind: input, shape index: {}]
  %s5 = inlined_call_operand.vmem [shape: f32[32,8], index: 5, kind: input, shape index: {}]
  %s6 = inlined_call_operand.vmem [shape: f32[1,8], index: 6, kind: input, shape index: {}]
  %s7 = inlined_call_operand.hbm [shape: f32[2,8], index: 7, kind: output, shape index: {}]
  %s8 = sld [smem:[#allocation0]]
  $region46: #{tpu_custom_call.1} parent=0
    _
  %s10 = ssub.s32 1, %s8
  %s11 = scalar_select 0, %s10, %s8
  $region1: #{tpu_custom_call.1} parent=0
    #allocation3 [shape = 'u8[8192]{0}', space=vmem, size = 0x2000, scoped, tag = 'input window, operand 0, single buffered']
    #allocation4 [shape = 's32[1]{0}', space=sflag, size = 0x4, scoped, tag = 'scoped memory for tpu_custom_call.1']
    #allocation5 [shape = 's32[1]{0}', space=sflag, size = 0x4, scoped, tag = 'scoped memory for tpu_custom_call.1']
    #allocation6 [shape = 'u8[8192]{0}', space=vmem, size = 0x2000, scoped, tag = 'input window, operand 1, single buffered']
    #allocation7 [shape = 's32[1]{0}', space=sflag, size = 0x4, scoped, tag = 'scoped memory for tpu_custom_call.1']
    #allocation8 [shape = 'u8[1024]{0}', space=vmem, size = 0x400, scoped, tag = 'output window, operand 0, single buffered']
    %12 = vsyncpa [#allocation4], 0
    %13 = vsyncpa [#allocation7], 0
    %14 = vsyncpa [#allocation5], 0
    // Predicated region
    $region2: #{tpu_custom_call.1} parent=1 // pred_check
      _
    $region3: #{tpu_custom_call.1} parent=1 // pred_check_branch
      %16 = sbr.rel (0) target = $region5
    $region4: #{tpu_custom_call.1} parent=1 // pred_region
      %18 = vsyncadd [#allocation4], 0
      %s19 = sshll.u32 %s0, 4
      %s20 = int_to_ptr.hbm [resolvable:$true] %s19
      %s21 = sshll.u32 [#allocation3], 4
      %s22 = int_to_ptr.vmem [resolvable:$true] %s21
      %27 = dma.hbm_to_vmem [thread:$0]  %s20, 256, %s22, [#allocation4], 128, 128, 8
    $region5: #{tpu_custom_call.1} parent=1 // pred_fallthru
      _
    // Predicated region
    $region6: #{tpu_custom_call.1} parent=1 // pred_check
      _
    $region7: #{tpu_custom_call.1} parent=1 // pred_check_branch
      %29 = sbr.rel (0) target = $region9
    $region8: #{tpu_custom_call.1} parent=1 // pred_region
      %31 = vsyncadd [#allocation7], 0
      %s32 = sshll.u32 %s1, 4
      %s33 = int_to_ptr.hbm [resolvable:$true] %s32
      %s34 = sshll.u32 [#allocation6], 4
      %s35 = int_to_ptr.vmem [resolvable:$true] %s34
      %40 = dma.hbm_to_vmem [thread:$0]  %s33, 256, %s35, [#allocation7], 128, 128, 8
    $region9: #{tpu_custom_call.1} parent=1 // pred_fallthru
      _
    // Predicated region
    $region10: #{tpu_custom_call.1} parent=1 // pred_check
      _
    $region11: #{tpu_custom_call.1} parent=1 // pred_check_branch
      %42 = sbr.rel (0) target = $region13
    $region12: #{tpu_custom_call.1} parent=1 // pred_region
      _
    $region13: #{tpu_custom_call.1} parent=1 // pred_fallthru
      _
    // Predicated region
    $region14: #{tpu_custom_call.1} parent=1 // pred_check
      _
    $region15: #{tpu_custom_call.1} parent=1 // pred_check_branch
      %44 = sbr.rel (0) target = $region17
    $region16: #{tpu_custom_call.1} parent=1 // pred_region
      _
    $region17: #{tpu_custom_call.1} parent=1 // pred_fallthru
      _
    // Predicated region
    $region18: #{tpu_custom_call.1} parent=1 // pred_check
      _
    $region19: #{tpu_custom_call.1} parent=1 // pred_check_branch
      %46 = sbr.rel (0) target = $region21
    $region20: #{tpu_custom_call.1} parent=1 // pred_region
      _
    $region21: #{tpu_custom_call.1} parent=1 // pred_fallthru
      _
    // Predicated region
    $region22: #{tpu_custom_call.1} parent=1 // pred_check
      _
    $region23: #{tpu_custom_call.1} parent=1 // pred_check_branch
      %48 = sbr.rel (0) target = $region25
    $region24: #{tpu_custom_call.1} parent=1 // pred_region
      _
    $region25: #{tpu_custom_call.1} parent=1 // pred_fallthru
      _
    // Predicated region
    $region26: #{tpu_custom_call.1} parent=1 // pred_check
      _
    $region27: #{tpu_custom_call.1} parent=1 // pred_check_branch
      %50 = sbr.rel (0) target = $region29
    $region28: #{tpu_custom_call.1} parent=1 // pred_region
      _
    $region29: #{tpu_custom_call.1} parent=1 // pred_fallthru
      _
    // Predicated region
    $region30: #{tpu_custom_call.1} parent=1 // pred_check
      _
    $region31: #{tpu_custom_call.1} parent=1 // pred_check_branch
      %52 = sbr.rel (0) target = $region33
    $region32: #{tpu_custom_call.1} parent=1 // pred_region
      %54 = dma.done [#allocation4], 256
    $region33: #{tpu_custom_call.1} parent=1 // pred_fallthru
      _
    // Predicated region
    $region34: #{tpu_custom_call.1} parent=1 // pred_check
      _
    $region35: #{tpu_custom_call.1} parent=1 // pred_check_branch
      %56 = sbr.rel (0) target = $region37
    $region36: #{tpu_custom_call.1} parent=1 // pred_region
      %58 = dma.done [#allocation7], 256
    $region37: #{tpu_custom_call.1} parent=1 // pred_fallthru
      _
    %v59 = vld [vmem:[#allocation3] sm:$0xff]
    %v60 = vld [vmem:[#allocation3 + $0x8] sm:$0xff]
    %v61 = vld [vmem:[#allocation6] sm:$0xff]
    %v62 = vld [vmem:[#allocation6 + $0x8] sm:$0xff]
    %v63 = vld [vmem:[%s3] sm:$0x1]
    %v65 = vperm.slane %v63, 0
    %vm67 = vcmask 130048
    %v69 = vsel %vm67, %v59, 0
    %v72 = vsel %vm67, %v60, 0
    %74 = vmatpush.msra.mxu0 0.0
    %75 = vmatpush.msra.mxu0 0.0
    %76 = vmatpush.msra.mxu0 0.0
    %77 = vmatpush.msra.mxu0 0.0
    %78 = vmatpush.msra.mxu0 0.0
    %79 = vmatpush.msra.mxu0 0.0
    %80 = vmatpush.msra.mxu0 0.0
    %81 = vmatpush.msra.mxu0 0.0
    %82 = vmatpush.msra.mxu0 0.0
    %83 = vmatpush.msra.mxu0 0.0
    %84 = vmatpush.msra.mxu0 0.0
    %85 = vmatpush.msra.mxu0 0.0
    %86 = vmatpush.msra.mxu0 0.0
    %87 = vmatpush.msra.mxu0 0.0
    %88 = vmatpush.msra.mxu0 %v62
    %89 = vmatpush.msra.mxu0 %v61
    %90 = vmatmul.f32.gmra.mxu0 %v69
    %v91 = vpop.f32.mrf.mxu0
    %v92 = vadd.f32 %v65, %v91
    %93 = vmatmul.f32.gmra.mxu0 %v72
    %v94 = vpop.f32.mrf.mxu0
    %v95 = vadd.f32 %v65, %v94
    %96 = vdwg.mxu0
    %vm97 = vcmask 785408
    %98 = vst.msk [vmem:[#allocation2] sm:$0xff] %vm97, %v92
    %99 = vst.msk [vmem:[#allocation2 + $0x8] sm:$0xff] %vm97, %v95
    %v100 = vld [vmem:[%s2] sm:$0xff]
    %v101 = vld [vmem:[%s2 + $0x8] sm:$0xff]
    %v102 = vld [vmem:[%s2 + $0x10] sm:$0xff]
    %v103 = vld [vmem:[%s2 + $0x18] sm:$0xff]
    %v104 = vld [vmem:[%s4] sm:$0x1]
    %v105 = vld [vmem:[#allocation2] sm:$0x3]
    %v107 = vperm.slane %v104, 0
    %vm109 = vcmask 261120
    %v111 = vsel %vm109, 0.0, 0
    %113 = vmatpush.msra.mxu0 0.0
    %114 = vmatpush.msra.mxu0 0.0
    %115 = vmatpush.msra.mxu0 0.0
    %116 = vmatpush.msra.mxu0 0.0
    %117 = vmatpush.msra.mxu0 0.0
    %118 = vmatpush.msra.mxu0 0.0
    %119 = vmatpush.msra.mxu0 0.0
    %120 = vmatpush.msra.mxu0 0.0
    %121 = vmatpush.msra.mxu0 0.0
    %122 = vmatpush.msra.mxu0 0.0
    %123 = vmatpush.msra.mxu0 0.0
    %124 = vmatpush.msra.mxu0 0.0
    %125 = vmatpush.msra.mxu0 %v103
    %126 = vmatpush.msra.mxu0 %v102
    %127 = vmatpush.msra.mxu0 %v101
    %128 = vmatpush.msra.mxu0 %v100
    %129 = vmatmul.f32.gmra.mxu0 %v111
    %v130 = vpop.f32.mrf.mxu0
    %v131 = vadd.f32 %v107, %v130
    %132 = vdwg.mxu0
    %v133 = vadd.f32 %v105, %v131
    %v134 = vxor.u32 %v133, 2147483648
    %v135 = vmul.f32 %v134, 1.442695
    %v136 = vpow.pop %v135
    %v137 = vadd.f32 %v136, 1.0
    %v138 = vrcp.pop %v137
    %v139 = vmul.f32 %v137, %v138
    %v140 = vsub.f32 1.0, %v139
    %v141 = vmul.f32 %v138, %v140
    %v142 = vadd.f32 %v138, %v141
    %vm143 = vweird.f32 %v137
    %vm144 = vweird.f32 %v138
    %vm145 = vmor %vm143, %vm144
    %v146 = vsel %vm145, %v138, %v142
    %v147 = vand.u32 2147483647, %v137
    %vm148 = vcmp.eq.f32.partialorder %v147, 8.507059e+37
    %v149 = vand.u32 %v137, 2147483648
    %v150 = vor.u32 1.1754944e-38, %v149
    %v151 = vsel %vm148, %v150, %v146
    %v152 = vmul.f32 1.0, %v151
    %154 = vrot.lane.b32.xlu0 %v131, 64
    %v155 = vpop.permute.xlu0 %154
    %v157 = vmul.f32 %v152, %v155
    %159 = vrot.lane.b32.xlu0 %v157, 64
    %v160 = vpop.permute.xlu0 %159
    %v162 = vadd.f32 %v105, %v160
    %v163 = vtanh.pop %v162
    %v164 = vsub.f32 0.0, %v163
    %166 = vrot.lane.b32.xlu0 %v164, 96
    %v167 = vpop.permute.xlu0 %166
    %v169 = vmul.f32 %v152, %v167
    %171 = vrot.lane.b32.xlu0 %v169, 32
    %v172 = vpop.permute.xlu0 %171
    %v174 = vadd.f32 %v163, %v172
    %v175 = vld [vmem:[#allocation2 + $0x2] sm:$0x3]
    %177 = vrot.lane.b32.xlu0 %v174, 64
    %v178 = vpop.permute.xlu0 %177
    %v179 = vsel %vm109, %v178, 0
    %181 = vmatpush.msra.mxu0 0.0
    %182 = vmatpush.msra.mxu0 0.0
    %183 = vmatpush.msra.mxu0 0.0
    %184 = vmatpush.msra.mxu0 0.0
    %185 = vmatpush.msra.mxu0 0.0
    %186 = vmatpush.msra.mxu0 0.0
    %187 = vmatpush.msra.mxu0 0.0
    %188 = vmatpush.msra.mxu0 0.0
    %189 = vmatpush.msra.mxu0 0.0
    %190 = vmatpush.msra.mxu0 0.0
    %191 = vmatpush.msra.mxu0 0.0
    %192 = vmatpush.msra.mxu0 0.0
    %193 = vmatpush.msra.mxu0 %v103
    %194 = vmatpush.msra.mxu0 %v102
    %195 = vmatpush.msra.mxu0 %v101
    %196 = vmatpush.msra.mxu0 %v100
    %197 = vmatmul.f32.gmra.mxu0 %v179
    %v198 = vpop.f32.mrf.mxu0
    %v199 = vadd.f32 %v107, %v198
    %200 = vdwg.mxu0
    %v201 = vadd.f32 %v175, %v199
    %v202 = vxor.u32 %v201, 2147483648
    %v203 = vmul.f32 %v202, 1.442695
    %v204 = vpow.pop %v203
    %v205 = vadd.f32 %v204, 1.0
    %v206 = vrcp.pop %v205
    %v207 = vmul.f32 %v205, %v206
    %v208 = vsub.f32 1.0, %v207
    %v209 = vmul.f32 %v206, %v208
    %v210 = vadd.f32 %v206, %v209
    %vm211 = vweird.f32 %v205
    %vm212 = vweird.f32 %v206
    %vm213 = vmor %vm211, %vm212
    %v214 = vsel %vm213, %v206, %v210
    %v215 = vand.u32 2147483647, %v205
    %vm216 = vcmp.eq.f32.partialorder %v215, 8.507059e+37
    %v217 = vand.u32 %v205, 2147483648
    %v218 = vor.u32 1.1754944e-38, %v217
    %v219 = vsel %vm216, %v218, %v214
    %v220 = vmul.f32 1.0, %v219
    %222 = vrot.lane.b32.xlu0 %v199, 64
    %v223 = vpop.permute.xlu0 %222
    %v225 = vmul.f32 %v220, %v223
    %227 = vrot.lane.b32.xlu0 %v225, 64
    %v228 = vpop.permute.xlu0 %227
    %v230 = vadd.f32 %v175, %v228
    %v231 = vtanh.pop %v230
    %v232 = vsub.f32 %v174, %v231
    %234 = vrot.lane.b32.xlu0 %v232, 96
    %v235 = vpop.permute.xlu0 %234
    %v237 = vmul.f32 %v220, %v235
    %239 = vrot.lane.b32.xlu0 %v237, 32
    %v240 = vpop.permute.xlu0 %239
    %v242 = vadd.f32 %v231, %v240
    %v243 = vld [vmem:[#allocation2 + $0x4] sm:$0x3]
    %245 = vrot.lane.b32.xlu0 %v242, 64
    %v246 = vpop.permute.xlu0 %245
    %v247 = vsel %vm109, %v246, 0
    %249 = vmatpush.msra.mxu0 0.0
    %250 = vmatpush.msra.mxu0 0.0
    %251 = vmatpush.msra.mxu0 0.0
    %252 = vmatpush.msra.mxu0 0.0
    %253 = vmatpush.msra.mxu0 0.0
    %254 = vmatpush.msra.mxu0 0.0
    %255 = vmatpush.msra.mxu0 0.0
    %256 = vmatpush.msra.mxu0 0.0
    %257 = vmatpush.msra.mxu0 0.0
    %258 = vmatpush.msra.mxu0 0.0
    %259 = vmatpush.msra.mxu0 0.0
    %260 = vmatpush.msra.mxu0 0.0
    %261 = vmatpush.msra.mxu0 %v103
    %262 = vmatpush.msra.mxu0 %v102
    %263 = vmatpush.msra.mxu0 %v101
    %264 = vmatpush.msra.mxu0 %v100
    %265 = vmatmul.f32.gmra.mxu0 %v247
    %v266 = vpop.f32.mrf.mxu0
    %v267 = vadd.f32 %v107, %v266
    %268 = vdwg.mxu0
    %v269 = vadd.f32 %v243, %v267
    %v270 = vxor.u32 %v269, 2147483648
    %v271 = vmul.f32 %v270, 1.442695
    %v272 = vpow.pop %v271
    %v273 = vadd.f32 %v272, 1.0
    %v274 = vrcp.pop %v273
    %v275 = vmul.f32 %v273, %v274
    %v276 = vsub.f32 1.0, %v275
    %v277 = vmul.f32 %v274, %v276
    %v278 = vadd.f32 %v274, %v277
    %vm279 = vweird.f32 %v273
    %vm280 = vweird.f32 %v274
    %vm281 = vmor %vm279, %vm280
    %v282 = vsel %vm281, %v274, %v278
    %v283 = vand.u32 2147483647, %v273
    %vm284 = vcmp.eq.f32.partialorder %v283, 8.507059e+37
    %v285 = vand.u32 %v273, 2147483648
    %v286 = vor.u32 1.1754944e-38, %v285
    %v287 = vsel %vm284, %v286, %v282
    %v288 = vmul.f32 1.0, %v287
    %290 = vrot.lane.b32.xlu0 %v267, 64
    %v291 = vpop.permute.xlu0 %290
    %v293 = vmul.f32 %v288, %v291
    %295 = vrot.lane.b32.xlu0 %v293, 64
    %v296 = vpop.permute.xlu0 %295
    %v298 = vadd.f32 %v243, %v296
    %v299 = vtanh.pop %v298
    %v300 = vsub.f32 %v242, %v299
    %302 = vrot.lane.b32.xlu0 %v300, 96
    %v303 = vpop.permute.xlu0 %302
    %v305 = vmul.f32 %v288, %v303
    %307 = vrot.lane.b32.xlu0 %v305, 32
    %v308 = vpop.permute.xlu0 %307
    %v310 = vadd.f32 %v299, %v308
    %v311 = vld [vmem:[#allocation2 + $0x6] sm:$0x3]
    %313 = vrot.lane.b32.xlu0 %v310, 64
    %v314 = vpop.permute.xlu0 %313
    %v315 = vsel %vm109, %v314, 0
    %317 = vmatpush.msra.mxu0 0.0
    %318 = vmatpush.msra.mxu0 0.0
    %319 = vmatpush.msra.mxu0 0.0
    %320 = vmatpush.msra.mxu0 0.0
    %321 = vmatpush.msra.mxu0 0.0
    %322 = vmatpush.msra.mxu0 0.0
    %323 = vmatpush.msra.mxu0 0.0
    %324 = vmatpush.msra.mxu0 0.0
    %325 = vmatpush.msra.mxu0 0.0
    %326 = vmatpush.msra.mxu0 0.0
    %327 = vmatpush.msra.mxu0 0.0
    %328 = vmatpush.msra.mxu0 0.0
    %329 = vmatpush.msra.mxu0 %v103
    %330 = vmatpush.msra.mxu0 %v102
    %331 = vmatpush.msra.mxu0 %v101
    %332 = vmatpush.msra.mxu0 %v100
    %333 = vmatmul.f32.gmra.mxu0 %v315
    %v334 = vpop.f32.mrf.mxu0
    %v335 = vadd.f32 %v107, %v334
    %336 = vdwg.mxu0
    %v337 = vadd.f32 %v311, %v335
    %v338 = vxor.u32 %v337, 2147483648
    %v339 = vmul.f32 %v338, 1.442695
    %v340 = vpow.pop %v339
    %v341 = vadd.f32 %v340, 1.0
    %v342 = vrcp.pop %v341
    %v343 = vmul.f32 %v341, %v342
    %v344 = vsub.f32 1.0, %v343
    %v345 = vmul.f32 %v342, %v344
    %v346 = vadd.f32 %v342, %v345
    %vm347 = vweird.f32 %v341
    %vm348 = vweird.f32 %v342
    %vm349 = vmor %vm347, %vm348
    %v350 = vsel %vm349, %v342, %v346
    %v351 = vand.u32 2147483647, %v341
    %vm352 = vcmp.eq.f32.partialorder %v351, 8.507059e+37
    %v353 = vand.u32 %v341, 2147483648
    %v354 = vor.u32 1.1754944e-38, %v353
    %v355 = vsel %vm352, %v354, %v350
    %v356 = vmul.f32 1.0, %v355
    %358 = vrot.lane.b32.xlu0 %v335, 64
    %v359 = vpop.permute.xlu0 %358
    %v361 = vmul.f32 %v356, %v359
    %363 = vrot.lane.b32.xlu0 %v361, 64
    %v364 = vpop.permute.xlu0 %363
    %v366 = vadd.f32 %v311, %v364
    %v367 = vtanh.pop %v366
    %v368 = vsub.f32 %v310, %v367
    %370 = vrot.lane.b32.xlu0 %v368, 96
    %v371 = vpop.permute.xlu0 %370
    %v373 = vmul.f32 %v356, %v371
    %375 = vrot.lane.b32.xlu0 %v373, 32
    %v376 = vpop.permute.xlu0 %375
    %v378 = vadd.f32 %v367, %v376
    %v379 = vld [vmem:[#allocation2 + $0x8] sm:$0x3]
    %381 = vrot.lane.b32.xlu0 %v378, 64
    %v382 = vpop.permute.xlu0 %381
    %v383 = vsel %vm109, %v382, 0
    %385 = vmatpush.msra.mxu0 0.0
    %386 = vmatpush.msra.mxu0 0.0
    %387 = vmatpush.msra.mxu0 0.0
    %388 = vmatpush.msra.mxu0 0.0
    %389 = vmatpush.msra.mxu0 0.0
    %390 = vmatpush.msra.mxu0 0.0
    %391 = vmatpush.msra.mxu0 0.0
    %392 = vmatpush.msra.mxu0 0.0
    %393 = vmatpush.msra.mxu0 0.0
    %394 = vmatpush.msra.mxu0 0.0
    %395 = vmatpush.msra.mxu0 0.0
    %396 = vmatpush.msra.mxu0 0.0
    %397 = vmatpush.msra.mxu0 %v103
    %398 = vmatpush.msra.mxu0 %v102
    %399 = vmatpush.msra.mxu0 %v101
    %400 = vmatpush.msra.mxu0 %v100
    %401 = vmatmul.f32.gmra.mxu0 %v383
    %v402 = vpop.f32.mrf.mxu0
    %v403 = vadd.f32 %v107, %v402
    %404 = vdwg.mxu0
    %v405 = vadd.f32 %v379, %v403
    %v406 = vxor.u32 %v405, 2147483648
    %v407 = vmul.f32 %v406, 1.442695
    %v408 = vpow.pop %v407
    %v409 = vadd.f32 %v408, 1.0
    %v410 = vrcp.pop %v409
    %v411 = vmul.f32 %v409, %v410
    %v412 = vsub.f32 1.0, %v411
    %v413 = vmul.f32 %v410, %v412
    %v414 = vadd.f32 %v410, %v413
    %vm415 = vweird.f32 %v409
    %vm416 = vweird.f32 %v410
    %vm417 = vmor %vm415, %vm416
    %v418 = vsel %vm417, %v410, %v414
    %v419 = vand.u32 2147483647, %v409
    %vm420 = vcmp.eq.f32.partialorder %v419, 8.507059e+37
    %v421 = vand.u32 %v409, 2147483648
    %v422 = vor.u32 1.1754944e-38, %v421
    %v423 = vsel %vm420, %v422, %v418
    %v424 = vmul.f32 1.0, %v423
    %426 = vrot.lane.b32.xlu0 %v403, 64
    %v427 = vpop.permute.xlu0 %426
    %v429 = vmul.f32 %v424, %v427
    %431 = vrot.lane.b32.xlu0 %v429, 64
    %v432 = vpop.permute.xlu0 %431
    %v434 = vadd.f32 %v379, %v432
    %v435 = vtanh.pop %v434
    %v436 = vsub.f32 %v378, %v435
    %438 = vrot.lane.b32.xlu0 %v436, 96
    %v439 = vpop.permute.xlu0 %438
    %v441 = vmul.f32 %v424, %v439
    %443 = vrot.lane.b32.xlu0 %v441, 32
    %v444 = vpop.permute.xlu0 %443
    %v446 = vadd.f32 %v435, %v444
    %v447 = vld [vmem:[#allocation2 + $0xa] sm:$0x3]
    %449 = vrot.lane.b32.xlu0 %v446, 64
    %v450 = vpop.permute.xlu0 %449
    %v451 = vsel %vm109, %v450, 0
    %453 = vmatpush.msra.mxu0 0.0
    %454 = vmatpush.msra.mxu0 0.0
    %455 = vmatpush.msra.mxu0 0.0
    %456 = vmatpush.msra.mxu0 0.0
    %457 = vmatpush.msra.mxu0 0.0
    %458 = vmatpush.msra.mxu0 0.0
    %459 = vmatpush.msra.mxu0 0.0
    %460 = vmatpush.msra.mxu0 0.0
    %461 = vmatpush.msra.mxu0 0.0
    %462 = vmatpush.msra.mxu0 0.0
    %463 = vmatpush.msra.mxu0 0.0
    %464 = vmatpush.msra.mxu0 0.0
    %465 = vmatpush.msra.mxu0 %v103
    %466 = vmatpush.msra.mxu0 %v102
    %467 = vmatpush.msra.mxu0 %v101
    %468 = vmatpush.msra.mxu0 %v100
    %469 = vmatmul.f32.gmra.mxu0 %v451
    %v470 = vpop.f32.mrf.mxu0
    %v471 = vadd.f32 %v107, %v470
    %472 = vdwg.mxu0
    %v473 = vadd.f32 %v447, %v471
    %v474 = vxor.u32 %v473, 2147483648
    %v475 = vmul.f32 %v474, 1.442695
    %v476 = vpow.pop %v475
    %v477 = vadd.f32 %v476, 1.0
    %v478 = vrcp.pop %v477
    %v479 = vmul.f32 %v477, %v478
    %v480 = vsub.f32 1.0, %v479
    %v481 = vmul.f32 %v478, %v480
    %v482 = vadd.f32 %v478, %v481
    %vm483 = vweird.f32 %v477
    %vm484 = vweird.f32 %v478
    %vm485 = vmor %vm483, %vm484
    %v486 = vsel %vm485, %v478, %v482
    %v487 = vand.u32 2147483647, %v477
    %vm488 = vcmp.eq.f32.partialorder %v487, 8.507059e+37
    %v489 = vand.u32 %v477, 2147483648
    %v490 = vor.u32 1.1754944e-38, %v489
    %v491 = vsel %vm488, %v490, %v486
    %v492 = vmul.f32 1.0, %v491
    %494 = vrot.lane.b32.xlu0 %v471, 64
    %v495 = vpop.permute.xlu0 %494
    %v497 = vmul.f32 %v492, %v495
    %499 = vrot.lane.b32.xlu0 %v497, 64
    %v500 = vpop.permute.xlu0 %499
    %v502 = vadd.f32 %v447, %v500
    %v503 = vtanh.pop %v502
    %v504 = vsub.f32 %v446, %v503
    %506 = vrot.lane.b32.xlu0 %v504, 96
    %v507 = vpop.permute.xlu0 %506
    %v509 = vmul.f32 %v492, %v507
    %511 = vrot.lane.b32.xlu0 %v509, 32
    %v512 = vpop.permute.xlu0 %511
    %v514 = vadd.f32 %v503, %v512
    %v515 = vld [vmem:[#allocation2 + $0xc] sm:$0x3]
    %517 = vrot.lane.b32.xlu0 %v514, 64
    %v518 = vpop.permute.xlu0 %517
    %v519 = vsel %vm109, %v518, 0
    %521 = vmatpush.msra.mxu0 0.0
    %522 = vmatpush.msra.mxu0 0.0
    %523 = vmatpush.msra.mxu0 0.0
    %524 = vmatpush.msra.mxu0 0.0
    %525 = vmatpush.msra.mxu0 0.0
    %526 = vmatpush.msra.mxu0 0.0
    %527 = vmatpush.msra.mxu0 0.0
    %528 = vmatpush.msra.mxu0 0.0
    %529 = vmatpush.msra.mxu0 0.0
    %530 = vmatpush.msra.mxu0 0.0
    %531 = vmatpush.msra.mxu0 0.0
    %532 = vmatpush.msra.mxu0 0.0
    %533 = vmatpush.msra.mxu0 %v103
    %534 = vmatpush.msra.mxu0 %v102
    %535 = vmatpush.msra.mxu0 %v101
    %536 = vmatpush.msra.mxu0 %v100
    %537 = vmatmul.f32.gmra.mxu0 %v519
    %v538 = vpop.f32.mrf.mxu0
    %v539 = vadd.f32 %v107, %v538
    %540 = vdwg.mxu0
    %v541 = vadd.f32 %v515, %v539
    %v542 = vxor.u32 %v541, 2147483648
    %v543 = vmul.f32 %v542, 1.442695
    %v544 = vpow.pop %v543
    %v545 = vadd.f32 %v544, 1.0
    %v546 = vrcp.pop %v545
    %v547 = vmul.f32 %v545, %v546
    %v548 = vsub.f32 1.0, %v547
    %v549 = vmul.f32 %v546, %v548
    %v550 = vadd.f32 %v546, %v549
    %vm551 = vweird.f32 %v545
    %vm552 = vweird.f32 %v546
    %vm553 = vmor %vm551, %vm552
    %v554 = vsel %vm553, %v546, %v550
    %v555 = vand.u32 2147483647, %v545
    %vm556 = vcmp.eq.f32.partialorder %v555, 8.507059e+37
    %v557 = vand.u32 %v545, 2147483648
    %v558 = vor.u32 1.1754944e-38, %v557
    %v559 = vsel %vm556, %v558, %v554
    %v560 = vmul.f32 1.0, %v559
    %562 = vrot.lane.b32.xlu0 %v539, 64
    %v563 = vpop.permute.xlu0 %562
    %v565 = vmul.f32 %v560, %v563
    %567 = vrot.lane.b32.xlu0 %v565, 64
    %v568 = vpop.permute.xlu0 %567
    %v570 = vadd.f32 %v515, %v568
    %v571 = vtanh.pop %v570
    %v572 = vsub.f32 %v514, %v571
    %574 = vrot.lane.b32.xlu0 %v572, 96
    %v575 = vpop.permute.xlu0 %574
    %v577 = vmul.f32 %v560, %v575
    %579 = vrot.lane.b32.xlu0 %v577, 32
    %v580 = vpop.permute.xlu0 %579
    %v582 = vadd.f32 %v571, %v580
    %v583 = vld [vmem:[#allocation2 + $0xe] sm:$0x3]
    %585 = vrot.lane.b32.xlu0 %v582, 64
    %v586 = vpop.permute.xlu0 %585
    %v587 = vsel %vm109, %v586, 0
    %589 = vmatpush.msra.mxu0 0.0
    %590 = vmatpush.msra.mxu0 0.0
    %591 = vmatpush.msra.mxu0 0.0
    %592 = vmatpush.msra.mxu0 0.0
    %593 = vmatpush.msra.mxu0 0.0
    %594 = vmatpush.msra.mxu0 0.0
    %595 = vmatpush.msra.mxu0 0.0
    %596 = vmatpush.msra.mxu0 0.0
    %597 = vmatpush.msra.mxu0 0.0
    %598 = vmatpush.msra.mxu0 0.0
    %599 = vmatpush.msra.mxu0 0.0
    %600 = vmatpush.msra.mxu0 0.0
    %601 = vmatpush.msra.mxu0 %v103
    %602 = vmatpush.msra.mxu0 %v102
    %603 = vmatpush.msra.mxu0 %v101
    %604 = vmatpush.msra.mxu0 %v100
    %605 = vmatmul.f32.gmra.mxu0 %v587
    %v606 = vpop.f32.mrf.mxu0
    %v607 = vadd.f32 %v107, %v606
    %608 = vdwg.mxu0
    %v609 = vadd.f32 %v583, %v607
    %v610 = vxor.u32 %v609, 2147483648
    %v611 = vmul.f32 %v610, 1.442695
    %v612 = vpow.pop %v611
    %v613 = vadd.f32 %v612, 1.0
    %v614 = vrcp.pop %v613
    %v615 = vmul.f32 %v613, %v614
    %v616 = vsub.f32 1.0, %v615
    %v617 = vmul.f32 %v614, %v616
    %v618 = vadd.f32 %v614, %v617
    %vm619 = vweird.f32 %v613
    %vm620 = vweird.f32 %v614
    %vm621 = vmor %vm619, %vm620
    %v622 = vsel %vm621, %v614, %v618
    %v623 = vand.u32 2147483647, %v613
    %vm624 = vcmp.eq.f32.partialorder %v623, 8.507059e+37
    %v625 = vand.u32 %v613, 2147483648
    %v626 = vor.u32 1.1754944e-38, %v625
    %v627 = vsel %vm624, %v626, %v622
    %v628 = vmul.f32 1.0, %v627
    %630 = vrot.lane.b32.xlu0 %v607, 64
    %v631 = vpop.permute.xlu0 %630
    %v633 = vmul.f32 %v628, %v631
    %635 = vrot.lane.b32.xlu0 %v633, 64
    %v636 = vpop.permute.xlu0 %635
    %v638 = vadd.f32 %v583, %v636
    %v639 = vtanh.pop %v638
    %v640 = vsub.f32 %v582, %v639
    %642 = vrot.lane.b32.xlu0 %v640, 96
    %v643 = vpop.permute.xlu0 %642
    %v645 = vmul.f32 %v628, %v643
    %647 = vrot.lane.b32.xlu0 %v645, 32
    %v648 = vpop.permute.xlu0 %647
    %v650 = vadd.f32 %v639, %v648
    %v651 = vld [vmem:[%s5] sm:$0xff]
    %v652 = vld [vmem:[%s5 + $0x8] sm:$0xff]
    %v653 = vld [vmem:[%s5 + $0x10] sm:$0xff]
    %v654 = vld [vmem:[%s5 + $0x18] sm:$0xff]
    %v655 = vld [vmem:[%s6] sm:$0x1]
    %v657 = vperm.slane %v655, 0
    %660 = vrot.lane.b32.xlu0 %v650, 64
    %v661 = vpop.permute.xlu0 %660
    %v662 = vsel %vm109, %v661, 0
    %664 = vmatpush.msra.mxu0 0.0
    %665 = vmatpush.msra.mxu0 0.0
    %666 = vmatpush.msra.mxu0 0.0
    %667 = vmatpush.msra.mxu0 0.0
    %668 = vmatpush.msra.mxu0 0.0
    %669 = vmatpush.msra.mxu0 0.0
    %670 = vmatpush.msra.mxu0 0.0
    %671 = vmatpush.msra.mxu0 0.0
    %672 = vmatpush.msra.mxu0 0.0
    %673 = vmatpush.msra.mxu0 0.0
    %674 = vmatpush.msra.mxu0 0.0
    %675 = vmatpush.msra.mxu0 0.0
    %676 = vmatpush.msra.mxu0 %v654
    %677 = vmatpush.msra.mxu0 %v653
    %678 = vmatpush.msra.mxu0 %v652
    %679 = vmatpush.msra.mxu0 %v651
    %680 = vmatmul.f32.gmra.mxu0 %v662
    %v681 = vpop.f32.mrf.mxu0
    %v682 = vadd.f32 %v657, %v681
    %683 = vdwg.mxu0
    %vm684 = vcmask 58368
    %685 = vst.msk [vmem:[#allocation8] sm:$0x3] %vm684, %v682
    // Predicated region
    $region38: #{tpu_custom_call.1} parent=1 // pred_check
      _
    $region39: #{tpu_custom_call.1} parent=1 // pred_check_branch
      %687 = sbr.rel (0) target = $region41
    $region40: #{tpu_custom_call.1} parent=1 // pred_region
      %689 = vsyncadd [#allocation5], 0
      %s691 = sshll.u32 [#allocation8], 4
      %s692 = int_to_ptr.vmem [resolvable:$true] %s691
      %s693 = sshll.u32 %s7, 4
      %s694 = int_to_ptr.hbm [resolvable:$true] %s693
      %696 = dma.vmem_to_hbm [thread:$0]  %s692, 32, %s694, [#allocation5]
    $region41: #{tpu_custom_call.1} parent=1 // pred_fallthru
      _
    // Predicated region
    $region42: #{tpu_custom_call.1} parent=1 // pred_check
      _
    $region43: #{tpu_custom_call.1} parent=1 // pred_check_branch
      %698 = sbr.rel (0) target = $region45
    $region44: #{tpu_custom_call.1} parent=1 // pred_region
      %700 = dma.done [#allocation5], 32
    $region45: #{tpu_custom_call.1} parent=1 // pred_fallthru
      _
    %701 = vsyncpa [#allocation4], 1
    %702 = vsyncpa [#allocation7], 1
    %703 = vsyncpa [#allocation5], 1

</llo_original>
